<compile_context>
chip_gen: v5e
topology: v5e:2x2
jax: 0.10.0
libtpu: 0.0.40
codegen_flags: <defaults>
</compile_context>

<pallas_src>
import functools

import jax
import jax.numpy as jnp
from jax import lax
from jax.experimental import pallas as pl
from jax.experimental.pallas import tpu as pltpu

_LANE = 128     # lanes per vreg / chunk width
_GROUP = 8      # 128-lane chunks statically unrolled per fori_loop step


def _rmask_iou_kernel(x_ref, t_ref, loss_ref, a_acc, d_acc, *,
                      smooth, naive_dice, n_chunks, tail_full, tail_rem,
                      m_blocks):
    """Grid: (row-block i [parallel], m-tile k [arbitrary, reduction])."""
    k = pl.program_id(1)

    @pl.when(k == 0)
    def _():
        a_acc[...] = jnp.zeros_like(a_acc)
        d_acc[...] = jnp.zeros_like(d_acc)

    tile_n = a_acc.shape[0]

    def add_chunk(xc, tc, a_p, d_p):
        xc = xc.astype(jnp.float32)
        tc = tc.astype(jnp.float32)
        a_p = a_p + xc * tc
        if naive_dice:
            d_p = d_p + (xc + tc)
        else:
            d_p = d_p + (xc * xc + tc * tc)
        return a_p, d_p

    def accumulate(num_full, rem):
        """Accumulate num_full unmasked chunks (+ one rem-lane masked chunk)."""
        a_p = jnp.zeros((tile_n, _LANE), jnp.float32)
        d_p = jnp.zeros((tile_n, _LANE), jnp.float32)

        n_groups = num_full // _GROUP      # static
        leftover = num_full % _GROUP       # static

        if n_groups > 0:
            # Bounded live ranges: each fori_loop step unrolls only _GROUP
            # chunks; chunk starts are 128-aligned (pl.multiple_of hint).
            def group_body(g, carry):
                a_c, d_c = carry
                base = pl.multiple_of(g * (_GROUP * _LANE), _LANE)
                for j in range(_GROUP):    # static unroll within the group
                    off = pl.multiple_of(base + j * _LANE, _LANE)
                    a_c, d_c = add_chunk(x_ref[:, pl.ds(off, _LANE)],
                                         t_ref[:, pl.ds(off, _LANE)],
                                         a_c, d_c)
                return a_c, d_c

            a_p, d_p = lax.fori_loop(0, n_groups, group_body, (a_p, d_p))

        base = n_groups * _GROUP * _LANE   # static from here on
        for j in range(leftover):
            off = base + j * _LANE
            a_p, d_p = add_chunk(x_ref[:, pl.ds(off, _LANE)],
                                 t_ref[:, pl.ds(off, _LANE)], a_p, d_p)

        if rem > 0:
            # Single partially-valid chunk of the ragged tail: mask BEFORE any
            # arithmetic so padding garbage (possibly NaN) cannot leak in.
            off = num_full * _LANE         # static
            valid = lax.broadcasted_iota(jnp.int32, (tile_n, _LANE), 1) < rem
            xc = jnp.where(valid, x_ref[:, pl.ds(off, _LANE)].astype(jnp.float32), 0.0)
            tc = jnp.where(valid, t_ref[:, pl.ds(off, _LANE)].astype(jnp.float32), 0.0)
            a_p, d_p = add_chunk(xc, tc, a_p, d_p)

        a_acc[...] += a_p
        d_acc[...] += d_p

    ragged = (tail_full != n_chunks) or (tail_rem != 0)
    if not ragged:
        accumulate(n_chunks, 0)
    elif m_blocks == 1:
        accumulate(tail_full, tail_rem)
    else:
        last = pl.num_programs(1) - 1

        @pl.when(k != last)                # interior tiles: no masking at all
        def _():
            accumulate(n_chunks, 0)

        @pl.when(k == last)                # ragged tail tile only
        def _():
            accumulate(tail_full, tail_rem)

    @pl.when(k == pl.num_programs(1) - 1)
    def _():
        a = jnp.sum(a_acc[...], axis=-1, keepdims=True)
        d = jnp.sum(d_acc[...], axis=-1, keepdims=True)
        if naive_dice:
            iou = (2.0 * a + smooth) / (d + smooth)
        else:
            iou = (2.0 * a) / (d + 2.0 * smooth)
        loss_ref[...] = (1.0 - iou).astype(loss_ref.dtype)


def _vmem_budgets():
    """(double-buffered input budget, vmem_limit_bytes), generation-aware."""
    cap = None
    try:
        cap = pltpu.get_tpu_info().vmem_capacity_bytes
    except Exception:
        cap = None
    if cap is not None and cap >= 100 * 1024 * 1024:      # v5e / v6e (128 MiB)
        return 24 * 1024 * 1024, 64 * 1024 * 1024
    return 16 * 1024 * 1024, 48 * 1024 * 1024             # v7x (64 MiB/TC) / unknown


def _choose_row_block(n):
    if n > 64:
        return 32
    if n >= 16:
        half = -(-n // 2)
        return -(-half // 8) * 8       # >=2 row blocks -> both v7x TCs get work
    # TODO(synk): for tiny N on v7x, split the M reduction across the two
    # TensorCores (per-core partial sums finalized in the wrapper) instead of
    # leaving one core idle.
    return n


def _choose_tiles(n, m, itemsize_sum, *, max_chunks, vmem_input_budget):
    """Pick (tile_n, tile_m, n_chunks); tile_m is a multiple of 128 lanes."""
    tile_n = _choose_row_block(n)
    m_chunks = -(-m // _LANE)
    # Double-buffered inputs: 2 buffers x tile_n x (chunks*128) x (sum of itemsizes).
    bytes_per_chunk = 2 * tile_n * _LANE * itemsize_sum
    budget_chunks = max(1, vmem_input_budget // bytes_per_chunk)
    n_chunks = max(1, min(m_chunks, max_chunks, budget_chunks))
    return tile_n, n_chunks * _LANE, n_chunks


def _per_sample_rmask_iou_loss(inp, tgt, *, smooth, naive_dice,
                               max_chunks=1024, cast_target_bf16=False):
    """Per-sample (N,) RMaskIoU loss via a streaming Pallas TPU reduction."""
    n = inp.shape[0]
    x = jnp.reshape(inp, (n, -1))          # free reshape, native dtype
    t = jnp.reshape(tgt, (n, -1))
    if cast_target_bf16:
        t = t.astype(jnp.bfloat16)         # lossless for binary masks (opt-in)
    m = x.shape[1]

    vmem_input_budget, vmem_limit = _vmem_budgets()
    itemsize_sum = jnp.dtype(x.dtype).itemsize + jnp.dtype(t.dtype).itemsize
    tile_n, tile_m, n_chunks = _choose_tiles(
        n, m, itemsize_sum, max_chunks=max_chunks,
        vmem_input_budget=vmem_input_budget)

    n_blocks = -(-n // tile_n)
    m_blocks = -(-m // tile_m)
    tail_valid = m - (m_blocks - 1) * tile_m    # in (0, tile_m]
    tail_full = tail_valid // _LANE
    tail_rem = tail_valid % _LANE

    kernel = functools.partial(
        _rmask_iou_kernel, smooth=float(smooth), naive_dice=bool(naive_dice),
        n_chunks=n_chunks, tail_full=tail_full, tail_rem=tail_rem,
        m_blocks=m_blocks)

    loss = pl.pallas_call(
        kernel,
        out_shape=jax.ShapeDtypeStruct((n, 1), jnp.float32),
        grid_spec=pltpu.PrefetchScalarGridSpec(
            num_scalar_prefetch=0,
            grid=(n_blocks, m_blocks),
            in_specs=[
                pl.BlockSpec((tile_n, tile_m), lambda i, k: (i, k)),
                pl.BlockSpec((tile_n, tile_m), lambda i, k: (i, k)),
            ],
            out_specs=pl.BlockSpec((tile_n, 1), lambda i, k: (i, 0)),
            scratch_shapes=[
                pltpu.VMEM((tile_n, _LANE), jnp.float32),  # lane-wide sum(x*t)
                pltpu.VMEM((tile_n, _LANE), jnp.float32),  # lane-wide denominator
            ],
        ),
        compiler_params=pltpu.CompilerParams(
            dimension_semantics=("parallel", "arbitrary"),
            vmem_limit_bytes=vmem_limit),
    )(x, t)
    return loss[:, 0]


def _weight_reduce_loss(loss, weight, reduction, avg_factor):
    if weight is not None:
        loss = loss * weight
    if avg_factor is None:
        if reduction == 'mean':
            return jnp.mean(loss)
        elif reduction == 'sum':
            return jnp.sum(loss)
        return loss
    else:
        if reduction == 'mean':
            return jnp.sum(loss) / avg_factor
        elif reduction == 'none':
            return loss
        raise ValueError('avg_factor can not be used with reduction="sum"')


class RMaskIoULoss:
    """JAX/Pallas port of PolarNeXt RMaskIoULoss (no learnable parameters)."""

    def __init__(self, reduction='mean', loss_weight=1.0, naive_dice=True,
                 smooth=1.0):
        self.reduction = reduction
        self.loss_weight = loss_weight
        self.naive_dice = naive_dice
        self.smooth = smooth

    def __call__(self, input, target, weight=None, reduction_override=None,
                 avg_factor=None, max_chunks=1024, cast_target_bf16=False):
        assert reduction_override in (None, 'none', 'mean', 'sum')
        reduction = reduction_override if reduction_override else self.reduction
        per_sample = _per_sample_rmask_iou_loss(
            input, target, smooth=self.smooth, naive_dice=self.naive_dice,
            max_chunks=max_chunks, cast_target_bf16=cast_target_bf16)
        if weight is not None:
            assert weight.ndim == per_sample.ndim
            assert weight.shape[0] == input.shape[0]
        # Weighting / reduction are tiny scalar epilogues -> plain JAX.
        loss = _weight_reduce_loss(per_sample, weight, reduction, avg_factor)
        return self.loss_weight * loss


if __name__ == "__main__":
    key = jax.random.PRNGKey(0)
    keys = jax.random.split(key, 8)

    def ref_per_sample(x, t, smooth, naive_dice):
        x = x.reshape(x.shape[0], -1).astype(jnp.float32)
        t = t.reshape(t.shape[0], -1).astype(jnp.float32)
        a = jnp.sum(x * t, axis=1)
        if naive_dice:
            iou = (2.0 * a + smooth) / (jnp.sum(x, 1) + jnp.sum(t, 1) + smooth)
        else:
            iou = 2.0 * a / (jnp.sum(x * x, 1) + jnp.sum(t * t, 1) + 2.0 * smooth)
        return 1.0 - iou

    # Test 1: single tile (M=256), fully static chunk path, both dice variants.
    pred = jax.nn.sigmoid(jax.random.normal(keys[0], (8, 16, 16), jnp.float32))
    gt = (jax.random.uniform(keys[1], (8, 16, 16)) > 0.5).astype(jnp.float32)
    for naive in (True, False):
        loss_fn = RMaskIoULoss(reduction='mean', loss_weight=1.0,
                               naive_dice=naive, smooth=1.0)
        out = jax.block_until_ready(loss_fn(pred, gt))
        ref = jnp.mean(ref_per_sample(pred, gt, 1.0, naive))
        assert jnp.allclose(out, ref, atol=1e-5, rtol=1e-5), (naive, out, ref)

    # Test 2: forced small tiles -> multi-tile reduction, unmasked interior
    # tiles and a masked ragged tail tile (M=576, tile_m=256).
    pred2 = jax.nn.sigmoid(jax.random.normal(keys[2], (8, 24, 24), jnp.float32))
    gt2 = (jax.random.uniform(keys[3], (8, 24, 24)) > 0.5).astype(jnp.float32)
    loss_fn2 = RMaskIoULoss(reduction='mean', loss_weight=2.0, naive_dice=True)
    out2 = jax.block_until_ready(loss_fn2(pred2, gt2, max_chunks=2))
    ref2 = 2.0 * jnp.mean(ref_per_sample(pred2, gt2, 1.0, True))
    assert jnp.allclose(out2, ref2, atol=1e-5, rtol=1e-5), (out2, ref2)

    # Test 3: 64x64 masks (M=4096, 32 full chunks) -> exercises the
    # lax.fori_loop group path with aligned dynamic lane offsets.
    pred3 = jax.nn.sigmoid(jax.random.normal(keys[4], (4, 64, 64), jnp.float32))
    gt3 = (jax.random.uniform(keys[5], (4, 64, 64)) > 0.5).astype(jnp.float32)
    loss_fn3 = RMaskIoULoss(reduction='sum', naive_dice=False)
    out3 = jax.block_until_ready(loss_fn3(pred3, gt3))
    ref3 = jnp.sum(ref_per_sample(pred3, gt3, 1.0, False))
    assert jnp.allclose(out3, ref3, atol=1e-5, rtol=1e-5), (out3, ref3)

    # Test 4: 60x60 masks (M=3600) -> fori groups + static leftover chunks +
    # masked 16-lane remainder, plus per-sample weights and reduction='none'.
    pred4 = jax.nn.sigmoid(jax.random.normal(keys[6], (4, 60, 60), jnp.float32))
    gt4 = (jax.random.uniform(keys[7], (4, 60, 60)) > 0.5).astype(jnp.float32)
    w4 = jnp.array([0.5, 1.0, 2.0, 0.0], jnp.float32)
    loss_fn4 = RMaskIoULoss(reduction='mean', naive_dice=True)
    out4 = jax.block_until_ready(
        loss_fn4(pred4, gt4, weight=w4, reduction_override='none'))
    ref4 = ref_per_sample(pred4, gt4, 1.0, True) * w4
    assert jnp.allclose(out4, ref4, atol=1e-5, rtol=1e-5), (out4, ref4)

    print("KERNEL_OK")
</pallas_src>

<mosaic_0001>
module attributes {stable_mosaic.version = 11 : i64} {
  func.func @_rmask_iou_kernel(%arg0: i32, %arg1: i32, %arg2: memref<8x256xf32, #tpu.memory_space<vmem>>, %arg3: memref<8x256xf32, #tpu.memory_space<vmem>>, %arg4: memref<8x1xf32, #tpu.memory_space<vmem>>, %arg5: memref<8x128xf32, #tpu.memory_space<vmem>>, %arg6: memref<8x128xf32, #tpu.memory_space<vmem>>) attributes {dimension_semantics = [#tpu.dimension_semantics<parallel>, #tpu.dimension_semantics<arbitrary>], iteration_bounds = array<i64: 1, 1>, scalar_prefetch = 0 : i64, scratch_operands = 2 : i64, tpu.core_type = #tpu.core_type<tc>, window_params = [{transform_indices = @transform_0, window_bounds = array<i64: 8, 256>}, {transform_indices = @transform_1, window_bounds = array<i64: 8, 256>}, {transform_indices = @transform_2, window_bounds = array<i64: 8, 1>}]} {
    %c0_i32 = arith.constant 0 : i32
    %0 = arith.cmpi eq, %arg1, %c0_i32 : i32
    %1 = arith.extui %0 : i1 to i32
    %c0_i32_0 = arith.constant 0 : i32
    %2 = arith.cmpi ne, %1, %c0_i32_0 : i32
    scf.if %2 {
      %cst_18 = arith.constant 0.000000e+00 : f32
      %26 = vector.broadcast %cst_18 : f32 to vector<8x128xf32>
      %c0_19 = arith.constant 0 : index
      %c0_20 = arith.constant 0 : index
      %27 = vector.load %arg5[%c0_19, %c0_20] : memref<8x128xf32, #tpu.memory_space<vmem>>, vector<8x128xf32>
      tpu.vector_store %arg5[%c0_19, %c0_20], %26 {strides = array<i32>} : memref<8x128xf32, #tpu.memory_space<vmem>>, vector<8x128xf32>,
      %cst_21 = arith.constant 0.000000e+00 : f32
      %28 = vector.broadcast %cst_21 : f32 to vector<8x128xf32>
      %c0_22 = arith.constant 0 : index
      %c0_23 = arith.constant 0 : index
      %29 = vector.load %arg6[%c0_22, %c0_23] : memref<8x128xf32, #tpu.memory_space<vmem>>, vector<8x128xf32>
      tpu.vector_store %arg6[%c0_22, %c0_23], %28 {strides = array<i32>} : memref<8x128xf32, #tpu.memory_space<vmem>>, vector<8x128xf32>,
    } else {
    }
    %cst = arith.constant 0.000000e+00 : f32
    %3 = vector.broadcast %cst : f32 to vector<8x128xf32>
    %cst_1 = arith.constant 0.000000e+00 : f32
    %4 = vector.broadcast %cst_1 : f32 to vector<8x128xf32>
    %c0 = arith.constant 0 : index
    %c0_2 = arith.constant 0 : index
    %5 = vector.load %arg2[%c0, %c0_2] : memref<8x256xf32, #tpu.memory_space<vmem>>, vector<8x128xf32>
    %c0_3 = arith.constant 0 : index
    %c0_4 = arith.constant 0 : index
    %6 = vector.load %arg3[%c0_3, %c0_4] : memref<8x256xf32, #tpu.memory_space<vmem>>, vector<8x128xf32>
    %7 = arith.mulf %5, %6 : vector<8x128xf32>
    %8 = arith.addf %3, %7 : vector<8x128xf32>
    %9 = arith.addf %5, %6 : vector<8x128xf32>
    %10 = arith.addf %4, %9 : vector<8x128xf32>
    %c0_5 = arith.constant 0 : index
    %c128 = arith.constant 128 : index
    %11 = vector.load %arg2[%c0_5, %c128] : memref<8x256xf32, #tpu.memory_space<vmem>>, vector<8x128xf32>
    %c0_6 = arith.constant 0 : index
    %c128_7 = arith.constant 128 : index
    %12 = vector.load %arg3[%c0_6, %c128_7] : memref<8x256xf32, #tpu.memory_space<vmem>>, vector<8x128xf32>
    %13 = arith.mulf %11, %12 : vector<8x128xf32>
    %14 = arith.addf %8, %13 : vector<8x128xf32>
    %15 = arith.addf %11, %12 : vector<8x128xf32>
    %16 = arith.addf %10, %15 : vector<8x128xf32>
    %c0_8 = arith.constant 0 : index
    %c0_9 = arith.constant 0 : index
    %17 = vector.load %arg5[%c0_8, %c0_9] : memref<8x128xf32, #tpu.memory_space<vmem>>, vector<8x128xf32>
    %18 = arith.addf %17, %14 : vector<8x128xf32>
    %c0_10 = arith.constant 0 : index
    %c0_11 = arith.constant 0 : index
    %19 = vector.load %arg5[%c0_10, %c0_11] : memref<8x128xf32, #tpu.memory_space<vmem>>, vector<8x128xf32>
    tpu.vector_store %arg5[%c0_10, %c0_11], %18 {strides = array<i32>} : memref<8x128xf32, #tpu.memory_space<vmem>>, vector<8x128xf32>,
    %c0_12 = arith.constant 0 : index
    %c0_13 = arith.constant 0 : index
    %20 = vector.load %arg6[%c0_12, %c0_13] : memref<8x128xf32, #tpu.memory_space<vmem>>, vector<8x128xf32>
    %21 = arith.addf %20, %16 : vector<8x128xf32>
    %c0_14 = arith.constant 0 : index
    %c0_15 = arith.constant 0 : index
    %22 = vector.load %arg6[%c0_14, %c0_15] : memref<8x128xf32, #tpu.memory_space<vmem>>, vector<8x128xf32>
    tpu.vector_store %arg6[%c0_14, %c0_15], %21 {strides = array<i32>} : memref<8x128xf32, #tpu.memory_space<vmem>>, vector<8x128xf32>,
    %c0_i32_16 = arith.constant 0 : i32
    %23 = arith.cmpi eq, %arg1, %c0_i32_16 : i32
    %24 = arith.extui %23 : i1 to i32
    %c0_i32_17 = arith.constant 0 : i32
    %25 = arith.cmpi ne, %24, %c0_i32_17 : i32
    scf.if %25 {
      %c0_18 = arith.constant 0 : index
      %c0_19 = arith.constant 0 : index
      %26 = vector.load %arg5[%c0_18, %c0_19] : memref<8x128xf32, #tpu.memory_space<vmem>>, vector<8x128xf32>
      %cst_20 = arith.constant dense<0.000000e+00> : vector<8xf32>
      %27 = vector.multi_reduction <add>, %26, %cst_20 [1] : vector<8x128xf32> to vector<8xf32>
      %28 = vector.shape_cast %27 : vector<8xf32> to vector<8x1xf32>
      %c0_21 = arith.constant 0 : index
      %c0_22 = arith.constant 0 : index
      %29 = vector.load %arg6[%c0_21, %c0_22] : memref<8x128xf32, #tpu.memory_space<vmem>>, vector<8x128xf32>
      %cst_23 = arith.constant dense<0.000000e+00> : vector<8xf32>
      %30 = vector.multi_reduction <add>, %29, %cst_23 [1] : vector<8x128xf32> to vector<8xf32>
      %31 = vector.shape_cast %30 : vector<8xf32> to vector<8x1xf32>
      %cst_24 = arith.constant 2.000000e+00 : f32
      %32 = vector.broadcast %cst_24 : f32 to vector<8x1xf32>
      %33 = arith.mulf %32, %28 : vector<8x1xf32>
      %cst_25 = arith.constant 1.000000e+00 : f32
      %34 = vector.broadcast %cst_25 : f32 to vector<8x1xf32>
      %35 = arith.addf %33, %34 : vector<8x1xf32>
      %cst_26 = arith.constant 1.000000e+00 : f32
      %36 = vector.broadcast %cst_26 : f32 to vector<8x1xf32>
      %37 = arith.addf %31, %36 : vector<8x1xf32>
      %38 = arith.divf %35, %37 : vector<8x1xf32>
      %cst_27 = arith.constant 1.000000e+00 : f32
      %39 = vector.broadcast %cst_27 : f32 to vector<8x1xf32>
      %40 = arith.subf %39, %38 : vector<8x1xf32>
      %c0_28 = arith.constant 0 : index
      %c0_29 = arith.constant 0 : index
      %41 = vector.load %arg4[%c0_28, %c0_29] : memref<8x1xf32, #tpu.memory_space<vmem>>, vector<8x1xf32>
      tpu.vector_store %arg4[%c0_28, %c0_29], %40 {strides = array<i32>} : memref<8x1xf32, #tpu.memory_space<vmem>>, vector<8x1xf32>,
    } else {
    }
    return
  }
  func.func @transform_0(%arg0: i32, %arg1: i32) -> (i32, i32) {
    %c0_i32 = arith.constant 0 : i32
    return %arg0, %arg1 : i32, i32
  }
  func.func @transform_1(%arg0: i32, %arg1: i32) -> (i32, i32) {
    %c0_i32 = arith.constant 0 : i32
    return %arg0, %arg1 : i32, i32
  }
  func.func @transform_2(%arg0: i32, %arg1: i32) -> (i32, i32) {
    %c0_i32 = arith.constant 0 : i32
    %c0_i32_0 = arith.constant 0 : i32
    return %arg0, %c0_i32 : i32, i32
  }
}

</mosaic_0001>

<llo_original>
// kernel: tpu_custom_call.1
$region0: #{tpu_custom_call.1}
  #allocation0 [shape = 'u32[]', space=smem, size = 0x4, offset = 0x4, fixed_abs, tag = 'smem constant byte address 0x4 - core index']
  #allocation1 [shape = 'u32[72,128]{1,0:T(1,128)}', space=vmem, size = 0x9000, scoped, tag = 'internal scratch']
  #allocation2 [shape = 'f32[8,128]{1,0:T(8,128)}', space=vmem, size = 0x1000, scoped, tag = 'scratch operand']
  #allocation3 [shape = 'f32[8,128]{1,0:T(8,128)}', space=vmem, size = 0x1000, scoped, tag = 'scratch operand']
  %s0 = inlined_call_operand.hbm [shape: f32[8,256], index: 0, kind: input, shape index: {}]
  %s1 = inlined_call_operand.hbm [shape: f32[8,256], index: 1, kind: input, shape index: {}]
  %s2 = inlined_call_operand.vmem [shape: f32[8,1], index: 2, kind: output, shape index: {}]
  %s3 = sld [smem:[#allocation0]]
  $region34: #{tpu_custom_call.1} parent=0
    _
  %s5 = ssub.s32 1, %s3
  %s6 = scalar_select 0, %s5, %s3
  $region1: #{tpu_custom_call.1} parent=0
    #allocation4 [shape = 'u8[8192]{0}', space=vmem, size = 0x2000, scoped, tag = 'input window, operand 0, single buffered']
    #allocation5 [shape = 's32[1]{0}', space=sflag, size = 0x4, scoped, tag = 'scoped memory for tpu_custom_call.1']
    #allocation6 [shape = 'u8[8192]{0}', space=vmem, size = 0x2000, scoped, tag = 'input window, operand 1, single buffered']
    #allocation7 [shape = 's32[1]{0}', space=sflag, size = 0x4, scoped, tag = 'scoped memory for tpu_custom_call.1']
    %7 = vsyncpa [#allocation5], 0
    %8 = vsyncpa [#allocation7], 0
    // Predicated region
    $region2: #{tpu_custom_call.1} parent=1 // pred_check
      _
    $region3: #{tpu_custom_call.1} parent=1 // pred_check_branch
      %10 = sbr.rel (0) target = $region5
    $region4: #{tpu_custom_call.1} parent=1 // pred_region
      %12 = vsyncadd [#allocation5], 0
      %s14 = sshll.u32 %s0, 4
      %s15 = int_to_ptr.hbm [resolvable:$true] %s14
      %s16 = sshll.u32 [#allocation4], 4
      %s17 = int_to_ptr.vmem [resolvable:$true] %s16
      %19 = dma.hbm_to_vmem [thread:$0]  %s15, 256, %s17, [#allocation5]
    $region5: #{tpu_custom_call.1} parent=1 // pred_fallthru
      _
    // Predicated region
    $region6: #{tpu_custom_call.1} parent=1 // pred_check
      _
    $region7: #{tpu_custom_call.1} parent=1 // pred_check_branch
      %21 = sbr.rel (0) target = $region9
    $region8: #{tpu_custom_call.1} parent=1 // pred_region
      %23 = vsyncadd [#allocation7], 0
      %s25 = sshll.u32 %s1, 4
      %s26 = int_to_ptr.hbm [resolvable:$true] %s25
      %s27 = sshll.u32 [#allocation6], 4
      %s28 = int_to_ptr.vmem [resolvable:$true] %s27
      %30 = dma.hbm_to_vmem [thread:$0]  %s26, 256, %s28, [#allocation7]
    $region9: #{tpu_custom_call.1} parent=1 // pred_fallthru
      _
    // Predicated region
    $region10: #{tpu_custom_call.1} parent=1 // pred_check
      _
    $region11: #{tpu_custom_call.1} parent=1 // pred_check_branch
      %32 = sbr.rel (0) target = $region13
    $region12: #{tpu_custom_call.1} parent=1 // pred_region
      %34 = dma.done [#allocation5], 256
    $region13: #{tpu_custom_call.1} parent=1 // pred_fallthru
      _
    // Predicated region
    $region14: #{tpu_custom_call.1} parent=1 // pred_check
      _
    $region15: #{tpu_custom_call.1} parent=1 // pred_check_branch
      %36 = sbr.rel (0) target = $region17
    $region16: #{tpu_custom_call.1} parent=1 // pred_region
      %38 = dma.done [#allocation7], 256
    $region17: #{tpu_custom_call.1} parent=1 // pred_fallthru
      _
    %p39 = scmp.eq.s32.totalorder 0, 0
    // Predicated region
    $region18: #{tpu_custom_call.1} parent=1 // pred_check
      %p40 = pneg %p39
    $region19: #{tpu_custom_call.1} parent=1 // pred_check_branch
      %42 = sbr.rel (%p40) target = $region21
    $region20: #{tpu_custom_call.1} parent=1 // pred_region
      %43 = vst [vmem:[#allocation2] sm:$0xff] 0.0
      %44 = vst [vmem:[#allocation3] sm:$0xff] 0.0
    $region21: #{tpu_custom_call.1} parent=1 // pred_fallthru
      _
    %v45 = vld [vmem:[#allocation4] sm:$0xff]
    %v46 = vld [vmem:[#allocation6] sm:$0xff]
    %v47 = vmul.f32 %v45, %v46
    %v48 = vadd.f32 %v47, 0.0
    %v49 = vadd.f32 %v45, %v46
    %v50 = vadd.f32 %v49, 0.0
    %v51 = vld [vmem:[#allocation4 + $0x8] sm:$0xff]
    %v52 = vld [vmem:[#allocation6 + $0x8] sm:$0xff]
    %v53 = vmul.f32 %v51, %v52
    %v54 = vadd.f32 %v48, %v53
    %v55 = vadd.f32 %v51, %v52
    %v56 = vadd.f32 %v50, %v55
    %v57 = vld [vmem:[#allocation2] sm:$0xff]
    %v58 = vadd.f32 %v57, %v54
    %59 = vst [vmem:[#allocation2] sm:$0xff] %v58
    %v60 = vld [vmem:[#allocation3] sm:$0xff]
    %v61 = vadd.f32 %v60, %v56
    %62 = vst [vmem:[#allocation3] sm:$0xff] %v61
    // Predicated region
    $region22: #{tpu_custom_call.1} parent=1 // pred_check
      %p63 = pneg %p39
    $region23: #{tpu_custom_call.1} parent=1 // pred_check_branch
      %65 = sbr.rel (%p63) target = $region25
    $region24: #{tpu_custom_call.1} parent=1 // pred_region
      %v66 = vld [vmem:[#allocation2] sm:$0xff]
      %67 = vadd.xlane.f32.xlu0 %v66
      %v68 = vpop.xlane.xlu0 %67
      %v69 = vld [vmem:[#allocation3] sm:$0xff]
      %70 = vadd.xlane.f32.xlu0 %v69
      %v71 = vpop.xlane.xlu0 %70
      %v72 = vmul.f32 %v68, 2.0
      %v73 = vadd.f32 %v72, 1.0
      %v74 = vadd.f32 %v71, 1.0
      %v75 = vrcp.pop %v74
      %v76 = vmul.f32 %v74, %v75
      %v77 = vsub.f32 1.0, %v76
      %v78 = vmul.f32 %v75, %v77
      %v79 = vadd.f32 %v75, %v78
      %vm80 = vweird.f32 %v74
      %vm81 = vweird.f32 %v75
      %vm82 = vmor %vm80, %vm81
      %v83 = vsel %vm82, %v75, %v79
      %v84 = vand.u32 2147483647, %v74
      %vm85 = vcmp.eq.f32.partialorder %v84, 8.507059e+37
      %v86 = vand.u32 %v74, 2147483648
      %v87 = vor.u32 1.1754944e-38, %v86
      %v88 = vsel %vm85, %v87, %v83
      %v89 = vmul.f32 %v73, %v88
      %v90 = vsub.f32 1.0, %v89
      %vm91 = vcmask 7168
      %92 = vst.msk [vmem:[%s2] sm:$0xff] %vm91, %v90
    $region25: #{tpu_custom_call.1} parent=1 // pred_fallthru
      _
    // Predicated region
    $region26: #{tpu_custom_call.1} parent=1 // pred_check
      _
    $region27: #{tpu_custom_call.1} parent=1 // pred_check_branch
      %94 = sbr.rel (0) target = $region29
    $region28: #{tpu_custom_call.1} parent=1 // pred_region
      _
    $region29: #{tpu_custom_call.1} parent=1 // pred_fallthru
      _
    // Predicated region
    $region30: #{tpu_custom_call.1} parent=1 // pred_check
      _
    $region31: #{tpu_custom_call.1} parent=1 // pred_check_branch
      %96 = sbr.rel (0) target = $region33
    $region32: #{tpu_custom_call.1} parent=1 // pred_region
      _
    $region33: #{tpu_custom_call.1} parent=1 // pred_fallthru
      _
    %97 = vsyncpa [#allocation5], 1
    %98 = vsyncpa [#allocation7], 1

</llo_original>
